<compile_context>
chip_gen: v5e
topology: v5e:2x2
jax: 0.10.0
libtpu: 0.0.40
codegen_flags: <defaults>
</compile_context>

<pallas_src>
import functools
import math

import jax
import jax.numpy as jnp
from jax.experimental import pallas as pl
from jax.experimental.pallas import tpu as pltpu


def _make_pe_table(max_len: int, embedding_dim: int) -> jnp.ndarray:
    """Replicates the torch buffer construction in __init__ (deterministic)."""
    position = jnp.arange(0.0, max_len, dtype=jnp.float32)[:, None]          # (L, 1)
    div_term = jnp.exp(
        jnp.arange(0.0, embedding_dim, 2.0, dtype=jnp.float32)
        * -(math.log(10000.0) / embedding_dim)
    )                                                                          # (D/2,)
    pe = jnp.zeros((max_len, embedding_dim), dtype=jnp.float32)
    pe = pe.at[:, 0::2].set(jnp.sin(position * div_term))
    pe = pe.at[:, 1::2].set(jnp.cos(position * div_term))
    return pe                                                                  # (L, D)


def _row_tile(b: int) -> int:
    # Full dim is always a legal block; otherwise a multiple of 8 with a masked
    # partial final block.
    return b if b <= 64 else 64


def _col_tile(sd: int) -> int:
    # Full dim is always a legal block; otherwise a multiple of 128 with a masked
    # partial final block. 64x2048 f32 tiles => ~512 KiB per buffer.
    return sd if sd <= 2048 else 2048


def _pe_dropout_kernel(seed_ref, x_ref, pe_ref, o_ref, *,
                       p: float, training: bool, tb: int, tc: int, total_cols: int):
    # x_ref: (TB, TC) block of the flattened (B, S*D) input; pe_ref: (1, TC).
    y = x_ref[...] + pe_ref[...]                     # broadcast over rows, lane-dense

    if training and p > 0.0:
        # Stateless inverted dropout: hash(seed, global element index) -> keep mask.
        # Drop probability ~ p (bias <= 2^-32; p == 1.0 keeps a ~2^-32 fraction).
        row0 = (pl.program_id(0) * tb).astype(jnp.uint32)
        col0 = (pl.program_id(1) * tc).astype(jnp.uint32)
        rows = jax.lax.broadcasted_iota(jnp.int32, y.shape, 0).astype(jnp.uint32)
        cols = jax.lax.broadcasted_iota(jnp.int32, y.shape, 1).astype(jnp.uint32)
        gidx = (row0 + rows) * jnp.uint32(total_cols) + (col0 + cols)

        seed = seed_ref[0].astype(jnp.uint32)
        h = gidx ^ (seed * jnp.uint32(0x9E3779B9))
        # splitmix32-style finalizer (XOR/shift/multiply on the VPU's 32-bit int ALUs)
        h = (h ^ (h >> 16)) * jnp.uint32(0x7FEB352D)
        h = (h ^ (h >> 15)) * jnp.uint32(0x846CA68B)
        h = h ^ (h >> 16)

        threshold = jnp.uint32(min(int(p * float(2 ** 32)), 2 ** 32 - 1))
        keep = h >= threshold
        scale = jnp.asarray(1.0 / (1.0 - p), dtype=y.dtype)
        y = jnp.where(keep, y * scale, jnp.zeros_like(y))

    o_ref[...] = y.astype(o_ref.dtype)


def positional_encoding_forward(x, pe_table, *, p: float, training: bool, seed: int = 0):
    """x: (B, S, D). Returns dropout(x + pe[:S]) with the same shape/dtype as x."""
    B, S, D = x.shape
    sd = S * D

    # Lane-dense layout: free reshapes (contiguous) in the wrapper.
    x2 = x.reshape(B, sd)
    pe2 = pe_table[:S].reshape(1, sd).astype(x.dtype)

    TB = _row_tile(B)
    TC = _col_tile(sd)
    grid = (pl.cdiv(B, TB), pl.cdiv(sd, TC))

    kernel = functools.partial(
        _pe_dropout_kernel,
        p=float(p), training=bool(training), tb=TB, tc=TC, total_cols=sd,
    )

    out2 = pl.pallas_call(
        kernel,
        out_shape=jax.ShapeDtypeStruct((B, sd), x.dtype),
        grid_spec=pltpu.PrefetchScalarGridSpec(
            num_scalar_prefetch=1,                 # dropout seed lives in SMEM
            grid=grid,
            in_specs=[
                pl.BlockSpec((TB, TC), lambda i, j, seed_ref: (i, j)),
                pl.BlockSpec((1, TC), lambda i, j, seed_ref: (0, j)),  # const in batch
            ],
            out_specs=pl.BlockSpec((TB, TC), lambda i, j, seed_ref: (i, j)),
        ),
        compiler_params=pltpu.CompilerParams(
            # Stateless hash -> no sequential PRNG state; both axes can be sharded
            # across TensorCores (matters on v7x megacore).
            dimension_semantics=("parallel", "parallel"),
        ),
    )(jnp.array([seed], dtype=jnp.int32), x2, pe2)

    return out2.reshape(B, S, D)


if __name__ == "__main__":
    # Module config
    embedding_dim = 32
    dropout_p = 0.1
    max_len = 5000

    # Input: (batch, seq, embedding_dim)
    B, S, D = 2, 8, embedding_dim
    key = jax.random.PRNGKey(0)
    x = jax.random.normal(key, (B, S, D), dtype=jnp.float32)

    pe_table = _make_pe_table(max_len, embedding_dim)
    y_ref = x + pe_table[None, :S, :]

    # Eval-mode run (dropout is identity) -- exact match against reference.
    y_eval = positional_encoding_forward(x, pe_table, p=dropout_p, training=False)
    jax.block_until_ready(y_eval)
    assert y_eval.shape == (B, S, D)
    assert jnp.allclose(y_eval, y_ref, atol=1e-6), "eval-mode mismatch vs reference"

    # Training-mode run (stochastic inverted dropout inside the kernel).
    y_train = positional_encoding_forward(
        x, pe_table, p=dropout_p, training=True, seed=1234
    )
    jax.block_until_ready(y_train)
    assert y_train.shape == (B, S, D)
    # Kept elements must equal (x + pe) / (1 - p); dropped elements are exactly 0.
    kept = y_train != 0.0
    scaled_ref = y_ref / (1.0 - dropout_p)
    assert jnp.allclose(
        jnp.where(kept, y_train, 0.0), jnp.where(kept, scaled_ref, 0.0), atol=1e-5
    ), "training-mode kept values not scaled correctly"
    drop_frac = 1.0 - float(jnp.mean(kept.astype(jnp.float32)))
    assert 0.0 <= drop_frac <= 0.5, f"implausible dropout fraction {drop_frac}"

    print("KERNEL_OK")
</pallas_src>

<mosaic_0001>
module attributes {stable_mosaic.version = 11 : i64} {
  func.func @_pe_dropout_kernel(%arg0: i32, %arg1: i32, %arg2: memref<1xi32, #tpu.memory_space<smem>>, %arg3: memref<2x256xf32, #tpu.memory_space<vmem>>, %arg4: memref<1x256xf32, #tpu.memory_space<vmem>>, %arg5: memref<2x256xf32, #tpu.memory_space<vmem>>) attributes {dimension_semantics = [#tpu.dimension_semantics<parallel>, #tpu.dimension_semantics<parallel>], iteration_bounds = array<i64: 1, 1>, scalar_prefetch = 1 : i64, scratch_operands = 0 : i64, tpu.core_type = #tpu.core_type<tc>, window_params = [{transform_indices = @transform_0, window_bounds = array<i64: 2, 256>}, {transform_indices = @transform_1, window_bounds = array<i64: 1, 256>}, {transform_indices = @transform_2, window_bounds = array<i64: 2, 256>}]} {
    %c0 = arith.constant 0 : index
    %c0_0 = arith.constant 0 : index
    %0 = vector.load %arg3[%c0, %c0_0] : memref<2x256xf32, #tpu.memory_space<vmem>>, vector<2x256xf32>
    %c0_1 = arith.constant 0 : index
    %c0_2 = arith.constant 0 : index
    %1 = vector.load %arg4[%c0_1, %c0_2] : memref<1x256xf32, #tpu.memory_space<vmem>>, vector<1x256xf32>
    %2 = vector.broadcast %1 : vector<1x256xf32> to vector<2x256xf32>
    %3 = arith.addf %0, %2 : vector<2x256xf32>
    %c0_3 = arith.constant 0 : index
    %c0_4 = arith.constant 0 : index
    %4 = vector.load %arg5[%c0_3, %c0_4] : memref<2x256xf32, #tpu.memory_space<vmem>>, vector<2x256xf32>
    tpu.vector_store %arg5[%c0_3, %c0_4], %3 {strides = array<i32>} : memref<2x256xf32, #tpu.memory_space<vmem>>, vector<2x256xf32>,
    return
  }
  func.func @transform_0(%arg0: i32, %arg1: i32, %arg2: memref<1xi32, #tpu.memory_space<smem>>) -> (i32, i32) {
    %c0_i32 = arith.constant 0 : i32
    return %arg0, %arg1 : i32, i32
  }
  func.func @transform_1(%arg0: i32, %arg1: i32, %arg2: memref<1xi32, #tpu.memory_space<smem>>) -> (i32, i32) {
    %c0_i32 = arith.constant 0 : i32
    %c0_i32_0 = arith.constant 0 : i32
    return %c0_i32, %arg1 : i32, i32
  }
  func.func @transform_2(%arg0: i32, %arg1: i32, %arg2: memref<1xi32, #tpu.memory_space<smem>>) -> (i32, i32) {
    %c0_i32 = arith.constant 0 : i32
    return %arg0, %arg1 : i32, i32
  }
}

</mosaic_0001>

<llo_original>
// kernel: tpu_custom_call.1
$region0: #{tpu_custom_call.1}
  #allocation0 [shape = 'u32[]', space=smem, size = 0x4, offset = 0x4, fixed_abs, tag = 'smem constant byte address 0x4 - core index']
  #allocation1 [shape = 'u32[72,128]{1,0:T(1,128)}', space=vmem, size = 0x9000, scoped, tag = 'internal scratch']
  #allocation2 [shape = 's32[1]{0}', space=sflag, size = 0x4, scoped, tag = 'scoped memory for tpu_custom_call.1']
  #allocation3 [shape = 's32[1]{0:T(128)S(6)}', space=smem, size = 0x200, scoped, tag = 'prefetched SMEM operand 0']
  %s0 = inlined_call_operand.<no memory space> [shape: s32[1], index: 0, kind: input, shape index: {}]
  %s1 = inlined_call_operand.hbm [shape: f32[2,256], index: 1, kind: input, shape index: {}]
  %s2 = inlined_call_operand.vmem [shape: f32[1,256], index: 2, kind: input, shape index: {}]
  %s3 = inlined_call_operand.hbm [shape: f32[2,256], index: 3, kind: output, shape index: {}]
  %s4 = sld [smem:[#allocation0]]
  $region22: #{tpu_custom_call.1} parent=0
    _
  %s6 = ssub.s32 1, %s4
  %s7 = scalar_select 0, %s6, %s4
  %8 = sst [smem:[#allocation3]] %s0
  $region1: #{tpu_custom_call.1} parent=0
    #allocation4 [shape = 'u8[2048]{0}', space=vmem, size = 0x800, scoped, tag = 'input window, operand 1, single buffered']
    #allocation5 [shape = 's32[1]{0}', space=sflag, size = 0x4, scoped, tag = 'scoped memory for tpu_custom_call.1']
    #allocation6 [shape = 's32[1]{0}', space=sflag, size = 0x4, scoped, tag = 'scoped memory for tpu_custom_call.1']
    #allocation7 [shape = 'u8[2048]{0}', space=vmem, size = 0x800, scoped, tag = 'output window, operand 0, single buffered']
    %9 = vsyncpa [#allocation5], 0
    %10 = vsyncpa [#allocation6], 0
    // Predicated region
    $region2: #{tpu_custom_call.1} parent=1 // pred_check
      _
    $region3: #{tpu_custom_call.1} parent=1 // pred_check_branch
      %12 = sbr.rel (0) target = $region5
    $region4: #{tpu_custom_call.1} parent=1 // pred_region
      %14 = vsyncadd [#allocation5], 0
      %s16 = sshll.u32 %s1, 4
      %s17 = int_to_ptr.hbm [resolvable:$true] %s16
      %s18 = sshll.u32 [#allocation4], 4
      %s19 = int_to_ptr.vmem [resolvable:$true] %s18
      %21 = dma.hbm_to_vmem [thread:$0]  %s17, 64, %s19, [#allocation5]
    $region5: #{tpu_custom_call.1} parent=1 // pred_fallthru
      _
    // Predicated region
    $region6: #{tpu_custom_call.1} parent=1 // pred_check
      _
    $region7: #{tpu_custom_call.1} parent=1 // pred_check_branch
      %23 = sbr.rel (0) target = $region9
    $region8: #{tpu_custom_call.1} parent=1 // pred_region
      _
    $region9: #{tpu_custom_call.1} parent=1 // pred_fallthru
      _
    // Predicated region
    $region10: #{tpu_custom_call.1} parent=1 // pred_check
      _
    $region11: #{tpu_custom_call.1} parent=1 // pred_check_branch
      %25 = sbr.rel (0) target = $region13
    $region12: #{tpu_custom_call.1} parent=1 // pred_region
      %27 = dma.done [#allocation5], 64
    $region13: #{tpu_custom_call.1} parent=1 // pred_fallthru
      _
    %v28 = vld [vmem:[#allocation4] sm:$0xf]
    %v29 = vld [vmem:[%s2] sm:$0x3]
    %v31 = vperm.slane %v29, 0
    %v32 = vperm.slane %v29, 1
    %v33 = vrot.slane %v32, 6
    %vm34 = vcmask 1041408
    %v35 = vsel %vm34, %v31, %v33
    %v37 = vadd.f32 %v28, %v35
    %38 = vst [vmem:[#allocation7] sm:$0xf] %v37
    // Predicated region
    $region14: #{tpu_custom_call.1} parent=1 // pred_check
      _
    $region15: #{tpu_custom_call.1} parent=1 // pred_check_branch
      %40 = sbr.rel (0) target = $region17
    $region16: #{tpu_custom_call.1} parent=1 // pred_region
      %42 = vsyncadd [#allocation6], 0
      %s44 = sshll.u32 [#allocation7], 4
      %s45 = int_to_ptr.vmem [resolvable:$true] %s44
      %s46 = sshll.u32 %s3, 4
      %s47 = int_to_ptr.hbm [resolvable:$true] %s46
      %49 = dma.vmem_to_hbm [thread:$0]  %s45, 64, %s47, [#allocation6]
    $region17: #{tpu_custom_call.1} parent=1 // pred_fallthru
      _
    // Predicated region
    $region18: #{tpu_custom_call.1} parent=1 // pred_check
      _
    $region19: #{tpu_custom_call.1} parent=1 // pred_check_branch
      %51 = sbr.rel (0) target = $region21
    $region20: #{tpu_custom_call.1} parent=1 // pred_region
      %53 = dma.done [#allocation6], 64
    $region21: #{tpu_custom_call.1} parent=1 // pred_fallthru
      _
    %54 = vsyncpa [#allocation5], 1
    %55 = vsyncpa [#allocation6], 1

</llo_original>
